<compile_context>
chip_gen: v7x
topology: tpu7x:2x2x1
jax: 0.10.0
libtpu: 0.0.40
codegen_flags: <defaults>
</compile_context>

<pallas_src>
import jax
import jax.numpy as jnp
from jax.experimental import pallas as pl
from jax.experimental.pallas import tpu as pltpu


def _round_up(x, m):
    return ((x + m - 1) // m) * m


def dqn_mlp_kernel(x_ref, w1_ref, b1_ref, w2_ref, b2_ref, w3_ref, b3_ref, out_ref):
    """Fused MLP forward for one batch tile: relu(relu(x@W1+b1)@W2+b2)@W3+b3.

    Weights are bf16 (MXU-native); activations / accumulation / bias / ReLU fp32.
    W3/b3 are lane-padded to 128 in VMEM; only the first actions_dim columns of
    the final result are stored (compact HBM output).
    """
    x = x_ref[...]  # (TILE_B, num_inputs) fp32

    # Layer 1: Linear(num_inputs, 128) + ReLU
    h1 = jnp.dot(x.astype(jnp.bfloat16), w1_ref[...],
                 preferred_element_type=jnp.float32)
    h1 = jnp.maximum(h1 + b1_ref[...], 0.0)

    # Layer 2: Linear(128, 128) + ReLU
    h2 = jnp.dot(h1.astype(jnp.bfloat16), w2_ref[...],
                 preferred_element_type=jnp.float32)
    h2 = jnp.maximum(h2 + b2_ref[...], 0.0)

    # Layer 3: Linear(128, actions_dim); matmul runs on the lane-padded W3,
    # then we slice to the compact output width before the store.
    out = jnp.dot(h2.astype(jnp.bfloat16), w3_ref[...],
                  preferred_element_type=jnp.float32)
    out = out + b3_ref[...]
    actions_dim = out_ref.shape[-1]
    out_ref[...] = out[:, :actions_dim].astype(out_ref.dtype)


def prepare_dqn_params(params):
    """One-time (per weight update) parameter prep: bf16 weights, lane-padded
    layer-3 weight/bias. Cache the result and reuse it across forward calls."""
    w1, b1, w2, b2, w3, b3 = params
    hidden = w1.shape[1]
    actions_dim = w3.shape[1]
    out_pad = 128 * pl.cdiv(actions_dim, 128)

    w1b = w1.astype(jnp.bfloat16)
    w2b = w2.astype(jnp.bfloat16)
    w3p = jnp.zeros((hidden, out_pad), jnp.bfloat16).at[:, :actions_dim].set(
        w3.astype(jnp.bfloat16))
    b3p = jnp.zeros((1, out_pad), jnp.float32).at[:, :actions_dim].set(b3)

    return {
        "w1": w1b, "b1": b1,
        "w2": w2b, "b2": b2,
        "w3": w3p, "b3": b3p,
        "actions_dim": actions_dim,
    }


def _choose_tile_b(batch, tile_b):
    """Pick a batch tile: multiple of 8, capped by batch, and split into >=2
    tiles when possible so the 'parallel' batch axis uses both v7x cores."""
    tile_b = max(8, min(tile_b, _round_up(batch, 8)))
    if batch > tile_b:          # already >= 2 grid tiles
        return tile_b
    if batch > 8:               # force >= 2 tiles (v7x megacore; cheap elsewhere)
        tile_b = _round_up(-(-batch // 2), 8)
    return tile_b


def dqn_forward(x, prepared, *, tile_b=512):
    """Pallas forward pass.

    x: (batch, num_inputs) fp32. prepared: output of prepare_dqn_params().
    Returns (batch, actions_dim) fp32.
    """
    w1b, b1 = prepared["w1"], prepared["b1"]
    w2b, b2 = prepared["w2"], prepared["b2"]
    w3p, b3p = prepared["w3"], prepared["b3"]
    actions_dim = prepared["actions_dim"]

    batch, num_inputs = x.shape
    hidden = w1b.shape[1]
    out_pad = w3p.shape[1]

    tile_b = _choose_tile_b(batch, tile_b)
    n_tiles = pl.cdiv(batch, tile_b)   # ragged tail handled by Pallas edge masking

    in_specs = [
        pl.BlockSpec((tile_b, num_inputs), lambda i: (i, 0)),   # x: tiled over batch
        pl.BlockSpec((num_inputs, hidden), lambda i: (0, 0)),   # w1: VMEM-resident
        pl.BlockSpec((1, hidden),          lambda i: (0, 0)),   # b1
        pl.BlockSpec((hidden, hidden),     lambda i: (0, 0)),   # w2
        pl.BlockSpec((1, hidden),          lambda i: (0, 0)),   # b2
        pl.BlockSpec((hidden, out_pad),    lambda i: (0, 0)),   # w3 (lane-padded)
        pl.BlockSpec((1, out_pad),         lambda i: (0, 0)),   # b3 (lane-padded)
    ]
    # Compact output: last block dim equals the full array dim (actions_dim).
    out_specs = pl.BlockSpec((tile_b, actions_dim), lambda i: (i, 0))

    return pl.pallas_call(
        dqn_mlp_kernel,
        out_shape=jax.ShapeDtypeStruct((batch, actions_dim), jnp.float32),
        grid=(n_tiles,),
        in_specs=in_specs,
        out_specs=out_specs,
        compiler_params=pltpu.CompilerParams(
            dimension_semantics=("parallel",),  # batch tiles independent -> megacore
        ),
    )(x, w1b, b1, w2b, b2, w3p, b3p)


def init_dqn_params(key, num_inputs, actions_dim, hidden=128):
    """Deterministic init mimicking PyTorch's default Linear init
    (uniform(-1/sqrt(fan_in), 1/sqrt(fan_in))). Params stored fp32."""
    keys = jax.random.split(key, 6)

    def linear(kw, kb, fan_in, fan_out):
        bound = 1.0 / jnp.sqrt(fan_in)
        w = jax.random.uniform(kw, (fan_in, fan_out), jnp.float32, -bound, bound)
        b = jax.random.uniform(kb, (1, fan_out), jnp.float32, -bound, bound)
        return w, b

    w1, b1 = linear(keys[0], keys[1], num_inputs, hidden)
    w2, b2 = linear(keys[2], keys[3], hidden, hidden)
    w3, b3 = linear(keys[4], keys[5], hidden, actions_dim)
    return (w1, b1, w2, b2, w3, b3)


def dqn_reference(x, params):
    """Pure-JAX reference mirroring the kernel's bf16-weight / fp32-accumulate math."""
    w1, b1, w2, b2, w3, b3 = params
    w1b, w2b, w3b = (w.astype(jnp.bfloat16) for w in (w1, w2, w3))
    h1 = jnp.maximum(
        jnp.dot(x.astype(jnp.bfloat16), w1b, preferred_element_type=jnp.float32) + b1, 0.0)
    h2 = jnp.maximum(
        jnp.dot(h1.astype(jnp.bfloat16), w2b, preferred_element_type=jnp.float32) + b2, 0.0)
    return jnp.dot(h2.astype(jnp.bfloat16), w3b, preferred_element_type=jnp.float32) + b3


if __name__ == "__main__":
    num_inputs = 32
    actions_dim = 8
    batch = 300  # non-multiple of tile_b to exercise the ragged edge-block path

    key = jax.random.PRNGKey(0)
    k_x, k_p = jax.random.split(key)

    x = jax.random.normal(k_x, (batch, num_inputs), dtype=jnp.float32)
    params = init_dqn_params(k_p, num_inputs, actions_dim)

    # Hoisted, cacheable parameter prep (done once per weight update).
    prepared = prepare_dqn_params(params)

    out = dqn_forward(x, prepared)
    out = jax.block_until_ready(out)

    ref = dqn_reference(x, params)
    assert out.shape == (batch, actions_dim)
    assert jnp.allclose(out, ref, atol=1e-3, rtol=1e-3), "Pallas output mismatch vs reference"

    print("KERNEL_OK")
</pallas_src>

<mosaic_0001>
module attributes {stable_mosaic.version = 11 : i64} {
  func.func @dqn_mlp_kernel(%arg0: i32, %arg1: memref<152x32xf32, #tpu.memory_space<vmem>>, %arg2: memref<32x128xbf16, #tpu.memory_space<vmem>>, %arg3: memref<1x128xf32, #tpu.memory_space<vmem>>, %arg4: memref<128x128xbf16, #tpu.memory_space<vmem>>, %arg5: memref<1x128xf32, #tpu.memory_space<vmem>>, %arg6: memref<128x128xbf16, #tpu.memory_space<vmem>>, %arg7: memref<1x128xf32, #tpu.memory_space<vmem>>, %arg8: memref<152x8xf32, #tpu.memory_space<vmem>>) attributes {dimension_semantics = [#tpu.dimension_semantics<parallel>], iteration_bounds = array<i64: 2>, scalar_prefetch = 0 : i64, scratch_operands = 0 : i64, tpu.core_type = #tpu.core_type<tc>, window_params = [{transform_indices = @transform_0, window_bounds = array<i64: 152, 32>}, {pipeline_mode = #tpu.pipeline_mode<synchronous>, transform_indices = @transform_1, window_bounds = array<i64: 32, 128>}, {pipeline_mode = #tpu.pipeline_mode<synchronous>, transform_indices = @transform_2, window_bounds = array<i64: 1, 128>}, {pipeline_mode = #tpu.pipeline_mode<synchronous>, transform_indices = @transform_3, window_bounds = array<i64: 128, 128>}, {pipeline_mode = #tpu.pipeline_mode<synchronous>, transform_indices = @transform_4, window_bounds = array<i64: 1, 128>}, {pipeline_mode = #tpu.pipeline_mode<synchronous>, transform_indices = @transform_5, window_bounds = array<i64: 128, 128>}, {pipeline_mode = #tpu.pipeline_mode<synchronous>, transform_indices = @transform_6, window_bounds = array<i64: 1, 128>}, {transform_indices = @transform_7, window_bounds = array<i64: 152, 8>}]} {
    %c0 = arith.constant 0 : index
    %c0_0 = arith.constant 0 : index
    %0 = vector.load %arg1[%c0, %c0_0] : memref<152x32xf32, #tpu.memory_space<vmem>>, vector<152x32xf32>
    %1 = arith.truncf %0 : vector<152x32xf32> to vector<152x32xbf16>
    %c0_1 = arith.constant 0 : index
    %c0_2 = arith.constant 0 : index
    %2 = vector.load %arg2[%c0_1, %c0_2] : memref<32x128xbf16, #tpu.memory_space<vmem>>, vector<32x128xbf16>
    %cst = arith.constant dense<0.000000e+00> : vector<152x128xf32>
    %3 = tpu.matmul %1, %2, %cst {dimension_numbers = #tpu.dot_dimension_numbers<[1], [0], [0], [1], [0, 0, 1, 1], [], []>} : vector<152x32xbf16>, vector<32x128xbf16>, vector<152x128xf32> -> vector<152x128xf32>
    %c0_3 = arith.constant 0 : index
    %c0_4 = arith.constant 0 : index
    %4 = vector.load %arg3[%c0_3, %c0_4] : memref<1x128xf32, #tpu.memory_space<vmem>>, vector<1x128xf32>
    %5 = vector.broadcast %4 : vector<1x128xf32> to vector<152x128xf32>
    %6 = arith.addf %3, %5 : vector<152x128xf32>
    %cst_5 = arith.constant 0.000000e+00 : f32
    %7 = vector.broadcast %cst_5 : f32 to vector<152x128xf32>
    %8 = arith.maximumf %6, %7 : vector<152x128xf32>
    %9 = arith.truncf %8 : vector<152x128xf32> to vector<152x128xbf16>
    %c0_6 = arith.constant 0 : index
    %c0_7 = arith.constant 0 : index
    %10 = vector.load %arg4[%c0_6, %c0_7] : memref<128x128xbf16, #tpu.memory_space<vmem>>, vector<128x128xbf16>
    %cst_8 = arith.constant dense<0.000000e+00> : vector<152x128xf32>
    %11 = tpu.matmul %9, %10, %cst_8 {dimension_numbers = #tpu.dot_dimension_numbers<[1], [0], [0], [1], [0, 0, 1, 1], [], []>} : vector<152x128xbf16>, vector<128x128xbf16>, vector<152x128xf32> -> vector<152x128xf32>
    %c0_9 = arith.constant 0 : index
    %c0_10 = arith.constant 0 : index
    %12 = vector.load %arg5[%c0_9, %c0_10] : memref<1x128xf32, #tpu.memory_space<vmem>>, vector<1x128xf32>
    %13 = vector.broadcast %12 : vector<1x128xf32> to vector<152x128xf32>
    %14 = arith.addf %11, %13 : vector<152x128xf32>
    %cst_11 = arith.constant 0.000000e+00 : f32
    %15 = vector.broadcast %cst_11 : f32 to vector<152x128xf32>
    %16 = arith.maximumf %14, %15 : vector<152x128xf32>
    %17 = arith.truncf %16 : vector<152x128xf32> to vector<152x128xbf16>
    %c0_12 = arith.constant 0 : index
    %c0_13 = arith.constant 0 : index
    %18 = vector.load %arg6[%c0_12, %c0_13] : memref<128x128xbf16, #tpu.memory_space<vmem>>, vector<128x128xbf16>
    %cst_14 = arith.constant dense<0.000000e+00> : vector<152x128xf32>
    %19 = tpu.matmul %17, %18, %cst_14 {dimension_numbers = #tpu.dot_dimension_numbers<[1], [0], [0], [1], [0, 0, 1, 1], [], []>} : vector<152x128xbf16>, vector<128x128xbf16>, vector<152x128xf32> -> vector<152x128xf32>
    %c0_15 = arith.constant 0 : index
    %c0_16 = arith.constant 0 : index
    %20 = vector.load %arg7[%c0_15, %c0_16] : memref<1x128xf32, #tpu.memory_space<vmem>>, vector<1x128xf32>
    %21 = vector.broadcast %20 : vector<1x128xf32> to vector<152x128xf32>
    %22 = arith.addf %19, %21 : vector<152x128xf32>
    %23 = vector.extract_strided_slice %22 {offsets = [0, 0], sizes = [152, 8], strides = [1, 1]} : vector<152x128xf32> to vector<152x8xf32>
    %c0_17 = arith.constant 0 : index
    %c0_18 = arith.constant 0 : index
    %24 = vector.load %arg8[%c0_17, %c0_18] : memref<152x8xf32, #tpu.memory_space<vmem>>, vector<152x8xf32>
    tpu.vector_store %arg8[%c0_17, %c0_18], %23 {strides = array<i32>} : memref<152x8xf32, #tpu.memory_space<vmem>>, vector<152x8xf32>,
    return
  }
  func.func @transform_0(%arg0: i32) -> (i32, i32) {
    %c0_i32 = arith.constant 0 : i32
    %c0_i32_0 = arith.constant 0 : i32
    return %arg0, %c0_i32 : i32, i32
  }
  func.func @transform_1(%arg0: i32) -> (i32, i32) {
    %c0_i32 = arith.constant 0 : i32
    %c0_i32_0 = arith.constant 0 : i32
    %c0_i32_1 = arith.constant 0 : i32
    return %c0_i32, %c0_i32_0 : i32, i32
  }
  func.func @transform_2(%arg0: i32) -> (i32, i32) {
    %c0_i32 = arith.constant 0 : i32
    %c0_i32_0 = arith.constant 0 : i32
    %c0_i32_1 = arith.constant 0 : i32
    return %c0_i32, %c0_i32_0 : i32, i32
  }
  func.func @transform_3(%arg0: i32) -> (i32, i32) {
    %c0_i32 = arith.constant 0 : i32
    %c0_i32_0 = arith.constant 0 : i32
    %c0_i32_1 = arith.constant 0 : i32
    return %c0_i32, %c0_i32_0 : i32, i32
  }
  func.func @transform_4(%arg0: i32) -> (i32, i32) {
    %c0_i32 = arith.constant 0 : i32
    %c0_i32_0 = arith.constant 0 : i32
    %c0_i32_1 = arith.constant 0 : i32
    return %c0_i32, %c0_i32_0 : i32, i32
  }
  func.func @transform_5(%arg0: i32) -> (i32, i32) {
    %c0_i32 = arith.constant 0 : i32
    %c0_i32_0 = arith.constant 0 : i32
    %c0_i32_1 = arith.constant 0 : i32
    return %c0_i32, %c0_i32_0 : i32, i32
  }
  func.func @transform_6(%arg0: i32) -> (i32, i32) {
    %c0_i32 = arith.constant 0 : i32
    %c0_i32_0 = arith.constant 0 : i32
    %c0_i32_1 = arith.constant 0 : i32
    return %c0_i32, %c0_i32_0 : i32, i32
  }
  func.func @transform_7(%arg0: i32) -> (i32, i32) {
    %c0_i32 = arith.constant 0 : i32
    %c0_i32_0 = arith.constant 0 : i32
    return %arg0, %c0_i32 : i32, i32
  }
}

</mosaic_0001>

<llo_original>
// kernel: tpu_custom_call.1
$region0: #{tpu_custom_call.1}
  #allocation0 [shape = 'u32[]', space=smem, size = 0x4, offset = 0x4, fixed_abs, tag = 'smem constant byte address 0x4 - core index']
  #allocation1 [shape = 'u32[144,128]{1,0:T(1,128)}', space=vmem, size = 0x12000, scoped, tag = 'internal scratch']
  %s0 = inlined_call_operand.vmem [shape: f32[300,32], index: 0, kind: input, shape index: {}]
  %s1 = inlined_call_operand.vmem [shape: bf16[32,128], index: 1, kind: input, shape index: {}]
  %s2 = inlined_call_operand.vmem [shape: f32[1,128], index: 2, kind: input, shape index: {}]
  %s3 = inlined_call_operand.vmem [shape: bf16[128,128], index: 3, kind: input, shape index: {}]
  %s4 = inlined_call_operand.vmem [shape: f32[1,128], index: 4, kind: input, shape index: {}]
  %s5 = inlined_call_operand.vmem [shape: bf16[128,128], index: 5, kind: input, shape index: {}]
  %s6 = inlined_call_operand.vmem [shape: f32[1,128], index: 6, kind: input, shape index: {}]
  %s7 = inlined_call_operand.vmem [shape: f32[300,8], index: 7, kind: output, shape index: {}]
  %s8 = sld [smem:[#allocation0]]
  $region61: #{tpu_custom_call.1} parent=0
    _
  %s10 = ssub.s32 1, %s8
  %s11 = scalar_select 0, %s10, %s8
  loop: start=0, step=1, limit=4
  $region2: #{tpu_custom_call.1} parent=0 // loop_pre_header
    _
  $region3: #{tpu_custom_call.1} parent=0 // loop_header
    %s13 = sphi 0, %s17
    %p14 = scmp.ge.s32.totalorder %s13, 4
    %s23 = sphi 0, %s25
    %s26 = sphi 0, %s23
    %s27 = sphi 0, %s26
    %s43 = sphi 0, %s27
    %s47 = sphi 0, %s47
    %s49 = sphi 0, %s47
    %s50 = sphi 0, %s49
    %s64 = sphi 0, %s50
    %s68 = sphi 0, %s68
    %s70 = sphi 0, %s68
    %s71 = sphi 0, %s70
    %s85 = sphi 0, %s71
    %s89 = sphi 0, %s89
    %s91 = sphi 0, %s89
    %s92 = sphi 0, %s91
    %s106 = sphi 0, %s92
    %s110 = sphi 0, %s110
    %s112 = sphi 0, %s110
    %s113 = sphi 0, %s112
    %s127 = sphi 0, %s113
    %s131 = sphi 0, %s131
    %s133 = sphi 0, %s131
    %s134 = sphi 0, %s133
    %s148 = sphi 0, %s134
    %s152 = sphi 0, %s152
    %s154 = sphi 0, %s152
    %s155 = sphi 0, %s154
    %s169 = sphi 0, %s155
    %s175 = sphi 0, %s177
    %s178 = sphi 0, %s175
    %s179 = sphi 0, %s178
    %s195 = sphi 0, %s179
  $region4: #{tpu_custom_call.1} parent=0 // loop_header_branch
    %16 = sbr.rel (%p14) target = $region8
  $region5: #{tpu_custom_call.1} parent=0 // loop_body
    %s18 = ssub.s32 %s13, 1
    %s19 = ssub.s32 %s13, 2
    %s20 = sadd.s32 %s13, 1
    %s21 = ssub.s32 %s13, %s20
    %p22 = scmp.eq.s32.totalorder %s21, 0
    %s24 = sadd.s32 %s23, 1
    %s25 = scalar_select %p22, %s23, %s24
    %p28 = pneg %p22
    %p29 = scmp.eq.s32.totalorder %s13, 1
    %p30 = por %p28, %p29
    %p31 = scmp.ne.s32.totalorder %s23, %s26
    %p32 = scmp.eq.s32.totalorder %s13, 0
    %p33 = por %p31, %p32
    %p34 = scmp.ne.s32.totalorder %s23, %s26
    %p35 = scmp.eq.s32.totalorder %s18, 1
    %p36 = por %p34, %p35
    %p37 = scmp.ne.s32.totalorder %s26, %s27
    %p38 = scmp.eq.s32.totalorder %s18, 0
    %p39 = por %p37, %p38
    %p40 = scmp.ne.s32.totalorder %s26, %s27
    %p41 = scmp.eq.s32.totalorder %s19, 1
    %p42 = por %p40, %p41
    %p44 = scmp.ne.s32.totalorder %s27, %s43
    %p45 = scmp.eq.s32.totalorder %s19, 0
    %p46 = por %p44, %p45
    %s48 = sadd.s32 %s47, 1
    %p51 = scmp.eq.s32.totalorder %s13, 1
    %p52 = scmp.ne.s32.totalorder %s47, %s49
    %p53 = scmp.eq.s32.totalorder %s13, 0
    %p54 = por %p52, %p53
    %p55 = scmp.ne.s32.totalorder %s47, %s49
    %p56 = scmp.eq.s32.totalorder %s18, 1
    %p57 = por %p55, %p56
    %p58 = scmp.ne.s32.totalorder %s49, %s50
    %p59 = scmp.eq.s32.totalorder %s18, 0
    %p60 = por %p58, %p59
    %p61 = scmp.ne.s32.totalorder %s49, %s50
    %p62 = scmp.eq.s32.totalorder %s19, 1
    %p63 = por %p61, %p62
    %p65 = scmp.ne.s32.totalorder %s50, %s64
    %p66 = scmp.eq.s32.totalorder %s19, 0
    %p67 = por %p65, %p66
    %s69 = sadd.s32 %s68, 1
    %p72 = scmp.eq.s32.totalorder %s13, 1
    %p73 = scmp.ne.s32.totalorder %s68, %s70
    %p74 = scmp.eq.s32.totalorder %s13, 0
    %p75 = por %p73, %p74
    %p76 = scmp.ne.s32.totalorder %s68, %s70
    %p77 = scmp.eq.s32.totalorder %s18, 1
    %p78 = por %p76, %p77
    %p79 = scmp.ne.s32.totalorder %s70, %s71
    %p80 = scmp.eq.s32.totalorder %s18, 0
    %p81 = por %p79, %p80
    %p82 = scmp.ne.s32.totalorder %s70, %s71
    %p83 = scmp.eq.s32.totalorder %s19, 1
    %p84 = por %p82, %p83
    %p86 = scmp.ne.s32.totalorder %s71, %s85
    %p87 = scmp.eq.s32.totalorder %s19, 0
    %p88 = por %p86, %p87
    %s90 = sadd.s32 %s89, 1
    %p93 = scmp.eq.s32.totalorder %s13, 1
    %p94 = scmp.ne.s32.totalorder %s89, %s91
    %p95 = scmp.eq.s32.totalorder %s13, 0
    %p96 = por %p94, %p95
    %p97 = scmp.ne.s32.totalorder %s89, %s91
    %p98 = scmp.eq.s32.totalorder %s18, 1
    %p99 = por %p97, %p98
    %p100 = scmp.ne.s32.totalorder %s91, %s92
    %p101 = scmp.eq.s32.totalorder %s18, 0
    %p102 = por %p100, %p101
    %p103 = scmp.ne.s32.totalorder %s91, %s92
    %p104 = scmp.eq.s32.totalorder %s19, 1
    %p105 = por %p103, %p104
    %p107 = scmp.ne.s32.totalorder %s92, %s106
    %p108 = scmp.eq.s32.totalorder %s19, 0
    %p109 = por %p107, %p108
    %s111 = sadd.s32 %s110, 1
    %p114 = scmp.eq.s32.totalorder %s13, 1
    %p115 = scmp.ne.s32.totalorder %s110, %s112
    %p116 = scmp.eq.s32.totalorder %s13, 0
    %p117 = por %p115, %p116
    %p118 = scmp.ne.s32.totalorder %s110, %s112
    %p119 = scmp.eq.s32.totalorder %s18, 1
    %p120 = por %p118, %p119
    %p121 = scmp.ne.s32.totalorder %s112, %s113
    %p122 = scmp.eq.s32.totalorder %s18, 0
    %p123 = por %p121, %p122
    %p124 = scmp.ne.s32.totalorder %s112, %s113
    %p125 = scmp.eq.s32.totalorder %s19, 1
    %p126 = por %p124, %p125
    %p128 = scmp.ne.s32.totalorder %s113, %s127
    %p129 = scmp.eq.s32.totalorder %s19, 0
    %p130 = por %p128, %p129
    %s132 = sadd.s32 %s131, 1
    %p135 = scmp.eq.s32.totalorder %s13, 1
    %p136 = scmp.ne.s32.totalorder %s131, %s133
    %p137 = scmp.eq.s32.totalorder %s13, 0
    %p138 = por %p136, %p137
    %p139 = scmp.ne.s32.totalorder %s131, %s133
    %p140 = scmp.eq.s32.totalorder %s18, 1
    %p141 = por %p139, %p140
    %p142 = scmp.ne.s32.totalorder %s133, %s134
    %p143 = scmp.eq.s32.totalorder %s18, 0
    %p144 = por %p142, %p143
    %p145 = scmp.ne.s32.totalorder %s133, %s134
    %p146 = scmp.eq.s32.totalorder %s19, 1
    %p147 = por %p145, %p146
    %p149 = scmp.ne.s32.totalorder %s134, %s148
    %p150 = scmp.eq.s32.totalorder %s19, 0
    %p151 = por %p149, %p150
    %s153 = sadd.s32 %s152, 1
    %p156 = scmp.eq.s32.totalorder %s13, 1
    %p157 = scmp.ne.s32.totalorder %s152, %s154
    %p158 = scmp.eq.s32.totalorder %s13, 0
    %p159 = por %p157, %p158
    %p160 = scmp.ne.s32.totalorder %s152, %s154
    %p161 = scmp.eq.s32.totalorder %s18, 1
    %p162 = por %p160, %p161
    %p163 = scmp.ne.s32.totalorder %s154, %s155
    %p164 = scmp.eq.s32.totalorder %s18, 0
    %p165 = por %p163, %p164
    %p166 = scmp.ne.s32.totalorder %s154, %s155
    %p167 = scmp.eq.s32.totalorder %s19, 1
    %p168 = por %p166, %p167
    %p170 = scmp.ne.s32.totalorder %s155, %s169
    %p171 = scmp.eq.s32.totalorder %s19, 0
    %p172 = por %p170, %p171
    %s173 = ssub.s32 %s13, %s20
    %p174 = scmp.eq.s32.totalorder %s173, 0
    %s176 = sadd.s32 %s175, 1
    %s177 = scalar_select %p174, %s175, %s176
    %p180 = pneg %p174
    %p181 = scmp.eq.s32.totalorder %s13, 1
    %p182 = por %p180, %p181
    %p183 = scmp.ne.s32.totalorder %s175, %s178
    %p184 = scmp.eq.s32.totalorder %s13, 0
    %p185 = por %p183, %p184
    %p186 = scmp.ne.s32.totalorder %s175, %s178
    %p187 = scmp.eq.s32.totalorder %s18, 1
    %p188 = por %p186, %p187
    %p189 = scmp.ne.s32.totalorder %s178, %s179
    %p190 = scmp.eq.s32.totalorder %s18, 0
    %p191 = por %p189, %p190
    %p192 = scmp.ne.s32.totalorder %s178, %s179
    %p193 = scmp.eq.s32.totalorder %s19, 1
    %p194 = por %p192, %p193
    %p196 = scmp.ne.s32.totalorder %s179, %s195
    %p197 = scmp.eq.s32.totalorder %s19, 0
    %p198 = por %p196, %p197
    %p199 = scmp.le.s32.totalorder 1, %s13
    %p200 = scmp.lt.s32.totalorder %s13, 3
    %p201 = pnand %p199, %p200
    %p202 = pneg %p201
    // Predicated region
    $region9: #{tpu_custom_call.1} parent=5 // pred_check
      _
    $region10: #{tpu_custom_call.1} parent=5 // pred_check_branch
      %204 = sbr.rel (%p201) target = $region12
    $region11: #{tpu_custom_call.1} parent=5 // pred_region
      %s205 = ssub.s32 %s13, 1
      // Predicated region
      $region13: #{tpu_custom_call.1} parent=11 // pred_check
        %p206 = pneg %p60
      $region14: #{tpu_custom_call.1} parent=11 // pred_check_branch
        %208 = sbr.rel (%p206) target = $region16
      $region15: #{tpu_custom_call.1} parent=11 // pred_region
        _
      $region16: #{tpu_custom_call.1} parent=11 // pred_fallthru
        _
      // Predicated region
      $region17: #{tpu_custom_call.1} parent=11 // pred_check
        %p209 = pneg %p81
      $region18: #{tpu_custom_call.1} parent=11 // pred_check_branch
        %211 = sbr.rel (%p209) target = $region20
      $region19: #{tpu_custom_call.1} parent=11 // pred_region
        _
      $region20: #{tpu_custom_call.1} parent=11 // pred_fallthru
        _
      // Predicated region
      $region21: #{tpu_custom_call.1} parent=11 // pred_check
        %p212 = pneg %p102
      $region22: #{tpu_custom_call.1} parent=11 // pred_check_branch
        %214 = sbr.rel (%p212) target = $region24
      $region23: #{tpu_custom_call.1} parent=11 // pred_region
        _
      $region24: #{tpu_custom_call.1} parent=11 // pred_fallthru
        _
      // Predicated region
      $region25: #{tpu_custom_call.1} parent=11 // pred_check
        %p215 = pneg %p123
      $region26: #{tpu_custom_call.1} parent=11 // pred_check_branch
        %217 = sbr.rel (%p215) target = $region28
      $region27: #{tpu_custom_call.1} parent=11 // pred_region
        _
      $region28: #{tpu_custom_call.1} parent=11 // pred_fallthru
        _
      // Predicated region
      $region29: #{tpu_custom_call.1} parent=11 // pred_check
        %p218 = pneg %p144
      $region30: #{tpu_custom_call.1} parent=11 // pred_check_branch
        %220 = sbr.rel (%p218) target = $region32
      $region31: #{tpu_custom_call.1} parent=11 // pred_region
        _
      $region32: #{tpu_custom_call.1} parent=11 // pred_fallthru
        _
      // Predicated region
      $region33: #{tpu_custom_call.1} parent=11 // pred_check
        %p221 = pneg %p165
      $region34: #{tpu_custom_call.1} parent=11 // pred_check_branch
        %223 = sbr.rel (%p221) target = $region36
      $region35: #{tpu_custom_call.1} parent=11 // pred_region
        _
      $region36: #{tpu_custom_call.1} parent=11 // pred_fallthru
        _
    $region12: #{tpu_custom_call.1} parent=5 // pred_fallthru
      _
    %p224 = scmp.lt.s32.totalorder %s13, 2
    // Predicated region
    $region37: #{tpu_custom_call.1} parent=5 // pred_check
      %p225 = pneg %p224
    $region38: #{tpu_custom_call.1} parent=5 // pred_check_branch
      %227 = sbr.rel (%p225) target = $region40
    $region39: #{tpu_custom_call.1} parent=5 // pred_region
      // Predicated region
      $region41: #{tpu_custom_call.1} parent=39 // pred_check
        %p228 = pneg %p33
      $region42: #{tpu_custom_call.1} parent=39 // pred_check_branch
        %230 = sbr.rel (%p228) target = $region44
      $region43: #{tpu_custom_call.1} parent=39 // pred_region
        %s231 = smul.u32 19, %s13
        %p232 = scmp.lt.s32.totalorder %s231, 37
        %s233 = scalar_select %p232, %s231, 37
        %s234 = smul.addr %s233, 8
        %s235 = scalar_lea.vmem %s0, %s234
        %s236 = smul.u32 19, %s13
      $region44: #{tpu_custom_call.1} parent=39 // pred_fallthru
        _
    $region40: #{tpu_custom_call.1} parent=5 // pred_fallthru
      _
    %p237 = scmp.le.s32.totalorder 1, %s13
    %p238 = scmp.lt.s32.totalorder %s13, 3
    %p239 = pnand %p237, %p238
    %p240 = pneg %p239
    // Predicated region
    $region45: #{tpu_custom_call.1} parent=5 // pred_check
      _
    $region46: #{tpu_custom_call.1} parent=5 // pred_check_branch
      %242 = sbr.rel (%p239) target = $region48
    $region47: #{tpu_custom_call.1} parent=5 // pred_region
      %s243 = ssub.s32 %s13, 1
      %s244 = smul.u32 19, %s18
      %p245 = scmp.lt.s32.totalorder %s244, 37
      %s246 = scalar_select %p245, %s244, 37
      %s247 = smul.addr %s246, 8
      %s248 = scalar_lea.vmem %s0, %s247
      %p249 = pneg %p39
      %p250 = pneg %p36
      %p251 = pneg %p60
      %p252 = pneg %p57
      %p253 = pneg %p81
      %p254 = pneg %p78
      %p255 = pneg %p102
      %p256 = pneg %p99
      %p257 = pneg %p123
      %p258 = pneg %p120
      %p259 = pneg %p144
      %p260 = pneg %p141
      %p261 = pneg %p165
      %p262 = pneg %p162
      %p263 = pneg %p191
      %p264 = pneg %p188
      %s265 = smul.u32 19, %s18
      %p266 = scmp.lt.s32.totalorder %s265, 37
      %s267 = scalar_select %p266, %s265, 37
      %s268 = smul.addr %s267, 8
      %s269 = scalar_lea.vmem %s7, %s268
      %s270 = smul.u32 19, %s18
      %p271 = scmp.lt.s32.totalorder %s270, 37
      %s272 = scalar_select %p271, %s270, 37
      %s273 = smul.addr %s272, 8
      %s274 = scalar_lea.vmem %s0, %s273
      %s275 = smul.u32 19, %s18
      %s276 = smul.u32 19, %s18
      %p277 = scmp.lt.s32.totalorder %s276, 37
      %s278 = scalar_select %p277, %s276, 37
      %s279 = smul.addr %s278, 8
      %s280 = scalar_lea.vmem %s7, %s279
      %s281 = smul.u32 19, %s18
      %v283 = vld [vmem:[%s274] sm:$0xff]
      %v284 = vld [vmem:[%s274 + $0x8] sm:$0xff]
      %v285 = vld [vmem:[%s274 + $0x10] sm:$0xff]
      %v286 = vld [vmem:[%s274 + $0x18] sm:$0xff]
      %v287 = vld [vmem:[%s274 + $0x20] sm:$0xff]
      %v288 = vld [vmem:[%s274 + $0x28] sm:$0xff]
      %v289 = vld [vmem:[%s274 + $0x30] sm:$0xff]
      %v290 = vld [vmem:[%s274 + $0x38] sm:$0xff]
      %v291 = vld [vmem:[%s274 + $0x40] sm:$0xff]
      %v292 = vld [vmem:[%s274 + $0x48] sm:$0xff]
      %v293 = vld [vmem:[%s274 + $0x50] sm:$0xff]
      %v294 = vld [vmem:[%s274 + $0x58] sm:$0xff]
      %v295 = vld [vmem:[%s274 + $0x60] sm:$0xff]
      %v296 = vld [vmem:[%s274 + $0x68] sm:$0xff]
      %v297 = vld [vmem:[%s274 + $0x70] sm:$0xff]
      %v298 = vld [vmem:[%s274 + $0x78] sm:$0xff]
      %v299 = vld [vmem:[%s274 + $0x80] sm:$0xff]
      %v300 = vld [vmem:[%s274 + $0x88] sm:$0xff]
      %v301 = vld [vmem:[%s274 + $0x90] sm:$0xff]
      %v302 = vpack.c.bf16 %v284, %v283
      %v303 = vpack.c.bf16 %v286, %v285
      %v304 = vpack.c.bf16 %v288, %v287
      %v305 = vpack.c.bf16 %v290, %v289
      %v306 = vpack.c.bf16 %v292, %v291
      %v307 = vpack.c.bf16 %v294, %v293
      %v308 = vpack.c.bf16 %v296, %v295
      %v309 = vpack.c.bf16 %v298, %v297
      %v310 = vpack.c.bf16 %v300, %v299
      %v311 = vpack.c.bf16 %v301, %v301
      %v312 = vld [vmem:[%s1] sm:$0xf]
      %v313 = vld [vmem:[%s1 + $0x4] sm:$0xf]
      %v314 = vld [vmem:[%s1 + $0x8] sm:$0xf]
      %v315 = vld [vmem:[%s1 + $0xc] sm:$0xf]
      %v316 = vld [vmem:[%s2] sm:$0x1]
      %v318 = vlaneseq
      %v319 = vshrl.u32 %v318, 7
      %v320 = vsub.s32 0, %v319
      %v321 = vrot.slane %v316, %v320
      %v327 = vunpack.c.l.b16 %v312
      %v328 = vunpack.c.l.b16 %v313
      %v329 = vunpack.c.l.b16 %v314
      %v330 = vunpack.c.l.b16 %v315
      %v331 = vpack.c.b16 %v328, %v327
      %v332 = vpack.c.b16 %v330, %v329
      %vm335 = vcmask 261120
      %v337 = vsel %vm335, %v302, 0
      %v340 = vsel %vm335, %v303, 0
      %v343 = vsel %vm335, %v304, 0
      %v346 = vsel %vm335, %v305, 0
      %v349 = vsel %vm335, %v306, 0
      %v352 = vsel %vm335, %v307, 0
      %v355 = vsel %vm335, %v308, 0
      %v358 = vsel %vm335, %v309, 0
      %v361 = vsel %vm335, %v310, 0
      %v364 = vsel %vm335, %v311, 0
      %366 = vmatprep.subr.bf16.mxu0 0
      %367 = vmatpush1.bf16.msra.mxu0 %v331
      %368 = vmatprep.subr.bf16.mxu0 0
      %369 = vmatpush1.bf16.msra.mxu0 %v332
      %370 = vmatprep.subr.bf16.mxu0 0
      %371 = vmatpush1.bf16.msra.mxu0 0
      %372 = vmatprep.subr.bf16.mxu0 0
      %373 = vmatpush1.bf16.msra.mxu0 0
      %374 = vmatprep.subr.bf16.mxu0 0
      %375 = vmatpush1.bf16.msra.mxu0 0
      %376 = vmatprep.subr.bf16.mxu0 0
      %377 = vmatpush1.bf16.msra.mxu0 0
      %378 = vmatprep.subr.bf16.mxu0 0
      %379 = vmatpush1.bf16.msra.mxu0 0
      %380 = vmatprep.subr.bf16.mxu0 0
      %381 = vmatpush1.bf16.msra.mxu0 0
      %382 = vmatprep.subr.bf16.mxu0 0
      %383 = vmatpush1.bf16.msra.mxu0 0
      %384 = vmatprep.subr.bf16.mxu0 0
      %385 = vmatpush1.bf16.msra.mxu0 0
      %386 = vmatprep.subr.bf16.mxu0 0
      %387 = vmatpush1.bf16.msra.mxu0 0
      %388 = vmatprep.subr.bf16.mxu0 0
      %389 = vmatpush1.bf16.msra.mxu0 0
      %390 = vmatprep.subr.bf16.mxu0 0
      %391 = vmatpush1.bf16.msra.mxu0 0
      %392 = vmatprep.subr.bf16.mxu0 0
      %393 = vmatpush1.bf16.msra.mxu0 0
      %394 = vmatprep.subr.bf16.mxu0 0
      %395 = vmatpush1.bf16.msra.mxu0 0
      %396 = vmatprep.subr.bf16.mxu0 0
      %397 = vmatpush1.bf16.msra.mxu0 0
      %398 = vmatprep.mubr.bf16.mxu0 0
      %399 = vmatmul.mubr.bf16.gmra.mrb[0].mxu0 %v337
      %v400 = vpop.f32.mrb[0].mxu0
      %v401 = vadd.f32 %v321, %v400
      %v402 = vpop.f32.mrb[0].mxu0
      %v403 = vpop.f32.mrb[0].mxu0
      %v404 = vadd.f32 %v321, %v403
      %v405 = vpop.f32.mrb[0].mxu0
      %406 = vmatprep.mubr.bf16.mxu0 0
      %407 = vmatmul.mubr.bf16.gmra.mrb[0].mxu0 %v340
      %v408 = vpop.f32.mrb[0].mxu0
      %v409 = vadd.f32 %v321, %v408
      %v410 = vpop.f32.mrb[0].mxu0
      %v411 = vpop.f32.mrb[0].mxu0
      %v412 = vadd.f32 %v321, %v411
      %v413 = vpop.f32.mrb[0].mxu0
      %414 = vmatprep.mubr.bf16.mxu0 0
      %415 = vmatmul.mubr.bf16.gmra.mrb[0].mxu0 %v343
      %v416 = vpop.f32.mrb[0].mxu0
      %v417 = vadd.f32 %v321, %v416
      %v418 = vpop.f32.mrb[0].mxu0
      %v419 = vpop.f32.mrb[0].mxu0
      %v420 = vadd.f32 %v321, %v419
      %v421 = vpop.f32.mrb[0].mxu0
      %422 = vmatprep.mubr.bf16.mxu0 0
      %423 = vmatmul.mubr.bf16.gmra.mrb[0].mxu0 %v346
      %v424 = vpop.f32.mrb[0].mxu0
      %v425 = vadd.f32 %v321, %v424
      %v426 = vpop.f32.mrb[0].mxu0
      %v427 = vpop.f32.mrb[0].mxu0
      %v428 = vadd.f32 %v321, %v427
      %v429 = vpop.f32.mrb[0].mxu0
      %430 = vmatprep.mubr.bf16.mxu0 0
      %431 = vmatmul.mubr.bf16.gmra.mrb[0].mxu0 %v349
      %v432 = vpop.f32.mrb[0].mxu0
      %v433 = vadd.f32 %v321, %v432
      %v434 = vpop.f32.mrb[0].mxu0
      %v435 = vpop.f32.mrb[0].mxu0
      %v436 = vadd.f32 %v321, %v435
      %v437 = vpop.f32.mrb[0].mxu0
      %438 = vmatprep.mubr.bf16.mxu0 0
      %439 = vmatmul.mubr.bf16.gmra.mrb[0].mxu0 %v352
      %v440 = vpop.f32.mrb[0].mxu0
      %v441 = vadd.f32 %v321, %v440
      %v442 = vpop.f32.mrb[0].mxu0
      %v443 = vpop.f32.mrb[0].mxu0
      %v444 = vadd.f32 %v321, %v443
      %v445 = vpop.f32.mrb[0].mxu0
      %446 = vmatprep.mubr.bf16.mxu0 0
      %447 = vmatmul.mubr.bf16.gmra.mrb[0].mxu0 %v355
      %v448 = vpop.f32.mrb[0].mxu0
      %v449 = vadd.f32 %v321, %v448
      %v450 = vpop.f32.mrb[0].mxu0
      %v451 = vpop.f32.mrb[0].mxu0
      %v452 = vadd.f32 %v321, %v451
      %v453 = vpop.f32.mrb[0].mxu0
      %454 = vmatprep.mubr.bf16.mxu0 0
      %455 = vmatmul.mubr.bf16.gmra.mrb[0].mxu0 %v358
      %v456 = vpop.f32.mrb[0].mxu0
      %v457 = vadd.f32 %v321, %v456
      %v458 = vpop.f32.mrb[0].mxu0
      %v459 = vpop.f32.mrb[0].mxu0
      %v460 = vadd.f32 %v321, %v459
      %v461 = vpop.f32.mrb[0].mxu0
      %462 = vmatprep.mubr.bf16.mxu0 0
      %463 = vmatmul.mubr.bf16.gmra.mrb[0].mxu0 %v361
      %v464 = vpop.f32.mrb[0].mxu0
      %v465 = vadd.f32 %v321, %v464
      %v466 = vpop.f32.mrb[0].mxu0
      %v467 = vpop.f32.mrb[0].mxu0
      %v468 = vadd.f32 %v321, %v467
      %v469 = vpop.f32.mrb[0].mxu0
      %470 = vmatprep.mubr.bf16.mxu0 0
      %471 = vmatmul.mubr.bf16.gmra.mrb[0].mxu0 %v364
      %v472 = vpop.f32.mrb[0].mxu0
      %v473 = vadd.f32 %v321, %v472
      %v474 = vpop.f32.mrb[0].mxu0
      %v475 = vpop.f32.mrb[0].mxu0
      %v476 = vpop.f32.mrb[0].mxu0
      %477 = vdwg.mxu0
      %v478 = vmax.f32 %v401, 0.0
      %v479 = vmax.f32 %v404, 0.0
      %v480 = vmax.f32 %v409, 0.0
      %v481 = vmax.f32 %v412, 0.0
      %v482 = vmax.f32 %v417, 0.0
      %v483 = vmax.f32 %v420, 0.0
      %v484 = vmax.f32 %v425, 0.0
      %v485 = vmax.f32 %v428, 0.0
      %v486 = vmax.f32 %v433, 0.0
      %v487 = vmax.f32 %v436, 0.0
      %v488 = vmax.f32 %v441, 0.0
      %v489 = vmax.f32 %v444, 0.0
      %v490 = vmax.f32 %v449, 0.0
      %v491 = vmax.f32 %v452, 0.0
      %v492 = vmax.f32 %v457, 0.0
      %v493 = vmax.f32 %v460, 0.0
      %v494 = vmax.f32 %v465, 0.0
      %v495 = vmax.f32 %v468, 0.0
      %v496 = vmax.f32 %v473, 0.0
      %v497 = vpack.c.bf16 %v479, %v478
      %v498 = vpack.c.bf16 %v481, %v480
      %v499 = vpack.c.bf16 %v483, %v482
      %v500 = vpack.c.bf16 %v485, %v484
      %v501 = vpack.c.bf16 %v487, %v486
      %v502 = vpack.c.bf16 %v489, %v488
      %v503 = vpack.c.bf16 %v491, %v490
      %v504 = vpack.c.bf16 %v493, %v492
      %v505 = vpack.c.bf16 %v495, %v494
      %v506 = vpack.c.bf16 %v496, %v496
      %v507 = vld [vmem:[%s3] sm:$0xf]
      %v508 = vld [vmem:[%s3 + $0x4] sm:$0xf]
      %v509 = vld [vmem:[%s3 + $0x8] sm:$0xf]
      %v510 = vld [vmem:[%s3 + $0xc] sm:$0xf]
      %v511 = vld [vmem:[%s3 + $0x10] sm:$0xf]
      %v512 = vld [vmem:[%s3 + $0x14] sm:$0xf]
      %v513 = vld [vmem:[%s3 + $0x18] sm:$0xf]
      %v514 = vld [vmem:[%s3 + $0x1c] sm:$0xf]
      %v515 = vld [vmem:[%s3 + $0x20] sm:$0xf]
      %v516 = vld [vmem:[%s3 + $0x24] sm:$0xf]
      %v517 = vld [vmem:[%s3 + $0x28] sm:$0xf]
      %v518 = vld [vmem:[%s3 + $0x2c] sm:$0xf]
      %v519 = vld [vmem:[%s3 + $0x30] sm:$0xf]
      %v520 = vld [vmem:[%s3 + $0x34] sm:$0xf]
      %v521 = vld [vmem:[%s3 + $0x38] sm:$0xf]
      %v522 = vld [vmem:[%s3 + $0x3c] sm:$0xf]
      %v523 = vld [vmem:[%s4] sm:$0x1]
      %v525 = vlaneseq
      %v526 = vshrl.u32 %v525, 7
      %v527 = vsub.s32 0, %v526
      %v528 = vrot.slane %v523, %v527
      %v546 = vunpack.c.l.b16 %v507
      %v547 = vunpack.c.l.b16 %v508
      %v548 = vunpack.c.l.b16 %v509
      %v549 = vunpack.c.l.b16 %v510
      %v550 = vunpack.c.l.b16 %v511
      %v551 = vunpack.c.l.b16 %v512
      %v552 = vunpack.c.l.b16 %v513
      %v553 = vunpack.c.l.b16 %v514
      %v554 = vunpack.c.l.b16 %v515
      %v555 = vunpack.c.l.b16 %v516
      %v556 = vunpack.c.l.b16 %v517
      %v557 = vunpack.c.l.b16 %v518
      %v558 = vunpack.c.l.b16 %v519
      %v559 = vunpack.c.l.b16 %v520
      %v560 = vunpack.c.l.b16 %v521
      %v561 = vunpack.c.l.b16 %v522
      %v562 = vpack.c.b16 %v547, %v546
      %v563 = vpack.c.b16 %v549, %v548
      %v564 = vpack.c.b16 %v551, %v550
      %v565 = vpack.c.b16 %v553, %v552
      %v566 = vpack.c.b16 %v555, %v554
      %v567 = vpack.c.b16 %v557, %v556
      %v568 = vpack.c.b16 %v559, %v558
      %v569 = vpack.c.b16 %v561, %v560
      %578 = vmatprep.subr.bf16.mxu0 0
      %579 = vmatpush1.bf16.msra.mxu0 %v562
      %580 = vmatprep.subr.bf16.mxu0 0
      %581 = vmatpush1.bf16.msra.mxu0 %v563
      %582 = vmatprep.subr.bf16.mxu0 0
      %583 = vmatpush1.bf16.msra.mxu0 %v564
      %584 = vmatprep.subr.bf16.mxu0 0
      %585 = vmatpush1.bf16.msra.mxu0 %v565
      %586 = vmatprep.subr.bf16.mxu0 0
      %587 = vmatpush1.bf16.msra.mxu0 %v566
      %588 = vmatprep.subr.bf16.mxu0 0
      %589 = vmatpush1.bf16.msra.mxu0 %v567
      %590 = vmatprep.subr.bf16.mxu0 0
      %591 = vmatpush1.bf16.msra.mxu0 %v568
      %592 = vmatprep.subr.bf16.mxu0 0
      %593 = vmatpush1.bf16.msra.mxu0 %v569
      %594 = vmatprep.subr.bf16.mxu0 0
      %595 = vmatpush1.bf16.msra.mxu0 0
      %596 = vmatprep.subr.bf16.mxu0 0
      %597 = vmatpush1.bf16.msra.mxu0 0
      %598 = vmatprep.subr.bf16.mxu0 0
      %599 = vmatpush1.bf16.msra.mxu0 0
      %600 = vmatprep.subr.bf16.mxu0 0
      %601 = vmatpush1.bf16.msra.mxu0 0
      %602 = vmatprep.subr.bf16.mxu0 0
      %603 = vmatpush1.bf16.msra.mxu0 0
      %604 = vmatprep.subr.bf16.mxu0 0
      %605 = vmatpush1.bf16.msra.mxu0 0
      %606 = vmatprep.subr.bf16.mxu0 0
      %607 = vmatpush1.bf16.msra.mxu0 0
      %608 = vmatprep.subr.bf16.mxu0 0
      %609 = vmatpush1.bf16.msra.mxu0 0
      %610 = vmatprep.mubr.bf16.mxu0 0
      %611 = vmatmul.mubr.bf16.gmra.mrb[0].mxu0 %v497
      %v612 = vpop.f32.mrb[0].mxu0
      %v613 = vadd.f32 %v528, %v612
      %v614 = vpop.f32.mrb[0].mxu0
      %v615 = vpop.f32.mrb[0].mxu0
      %v616 = vadd.f32 %v528, %v615
      %v617 = vpop.f32.mrb[0].mxu0
      %618 = vmatprep.mubr.bf16.mxu0 0
      %619 = vmatmul.mubr.bf16.gmra.mrb[0].mxu0 %v498
      %v620 = vpop.f32.mrb[0].mxu0
      %v621 = vadd.f32 %v528, %v620
      %v622 = vpop.f32.mrb[0].mxu0
      %v623 = vpop.f32.mrb[0].mxu0
      %v624 = vadd.f32 %v528, %v623
      %v625 = vpop.f32.mrb[0].mxu0
      %626 = vmatprep.mubr.bf16.mxu0 0
      %627 = vmatmul.mubr.bf16.gmra.mrb[0].mxu0 %v499
      %v628 = vpop.f32.mrb[0].mxu0
      %v629 = vadd.f32 %v528, %v628
      %v630 = vpop.f32.mrb[0].mxu0
      %v631 = vpop.f32.mrb[0].mxu0
      %v632 = vadd.f32 %v528, %v631
      %v633 = vpop.f32.mrb[0].mxu0
      %634 = vmatprep.mubr.bf16.mxu0 0
      %635 = vmatmul.mubr.bf16.gmra.mrb[0].mxu0 %v500
      %v636 = vpop.f32.mrb[0].mxu0
      %v637 = vadd.f32 %v528, %v636
      %v638 = vpop.f32.mrb[0].mxu0
      %v639 = vpop.f32.mrb[0].mxu0
      %v640 = vadd.f32 %v528, %v639
      %v641 = vpop.f32.mrb[0].mxu0
      %642 = vmatprep.mubr.bf16.mxu0 0
      %643 = vmatmul.mubr.bf16.gmra.mrb[0].mxu0 %v501
      %v644 = vpop.f32.mrb[0].mxu0
      %v645 = vadd.f32 %v528, %v644
      %v646 = vpop.f32.mrb[0].mxu0
      %v647 = vpop.f32.mrb[0].mxu0
      %v648 = vadd.f32 %v528, %v647
      %v649 = vpop.f32.mrb[0].mxu0
      %650 = vmatprep.mubr.bf16.mxu0 0
      %651 = vmatmul.mubr.bf16.gmra.mrb[0].mxu0 %v502
      %v652 = vpop.f32.mrb[0].mxu0
      %v653 = vadd.f32 %v528, %v652
      %v654 = vpop.f32.mrb[0].mxu0
      %v655 = vpop.f32.mrb[0].mxu0
      %v656 = vadd.f32 %v528, %v655
      %v657 = vpop.f32.mrb[0].mxu0
      %658 = vmatprep.mubr.bf16.mxu0 0
      %659 = vmatmul.mubr.bf16.gmra.mrb[0].mxu0 %v503
      %v660 = vpop.f32.mrb[0].mxu0
      %v661 = vadd.f32 %v528, %v660
      %v662 = vpop.f32.mrb[0].mxu0
      %v663 = vpop.f32.mrb[0].mxu0
      %v664 = vadd.f32 %v528, %v663
      %v665 = vpop.f32.mrb[0].mxu0
      %666 = vmatprep.mubr.bf16.mxu0 0
      %667 = vmatmul.mubr.bf16.gmra.mrb[0].mxu0 %v504
      %v668 = vpop.f32.mrb[0].mxu0
      %v669 = vadd.f32 %v528, %v668
      %v670 = vpop.f32.mrb[0].mxu0
      %v671 = vpop.f32.mrb[0].mxu0
      %v672 = vadd.f32 %v528, %v671
      %v673 = vpop.f32.mrb[0].mxu0
      %674 = vmatprep.mubr.bf16.mxu0 0
      %675 = vmatmul.mubr.bf16.gmra.mrb[0].mxu0 %v505
      %v676 = vpop.f32.mrb[0].mxu0
      %v677 = vadd.f32 %v528, %v676
      %v678 = vpop.f32.mrb[0].mxu0
      %v679 = vpop.f32.mrb[0].mxu0
      %v680 = vadd.f32 %v528, %v679
      %v681 = vpop.f32.mrb[0].mxu0
      %682 = vmatprep.mubr.bf16.mxu0 0
      %683 = vmatmul.mubr.bf16.gmra.mrb[0].mxu0 %v506
      %v684 = vpop.f32.mrb[0].mxu0
      %v685 = vadd.f32 %v528, %v684
      %v686 = vpop.f32.mrb[0].mxu0
      %v687 = vpop.f32.mrb[0].mxu0
      %v688 = vpop.f32.mrb[0].mxu0
      %689 = vdwg.mxu0
      %v690 = vmax.f32 %v613, 0.0
      %v691 = vmax.f32 %v616, 0.0
      %v692 = vmax.f32 %v621, 0.0
      %v693 = vmax.f32 %v624, 0.0
      %v694 = vmax.f32 %v629, 0.0
      %v695 = vmax.f32 %v632, 0.0
      %v696 = vmax.f32 %v637, 0.0
      %v697 = vmax.f32 %v640, 0.0
      %v698 = vmax.f32 %v645, 0.0
      %v699 = vmax.f32 %v648, 0.0
      %v700 = vmax.f32 %v653, 0.0
      %v701 = vmax.f32 %v656, 0.0
      %v702 = vmax.f32 %v661, 0.0
      %v703 = vmax.f32 %v664, 0.0
      %v704 = vmax.f32 %v669, 0.0
      %v705 = vmax.f32 %v672, 0.0
      %v706 = vmax.f32 %v677, 0.0
      %v707 = vmax.f32 %v680, 0.0
      %v708 = vmax.f32 %v685, 0.0
      %v709 = vpack.c.bf16 %v691, %v690
      %v710 = vpack.c.bf16 %v693, %v692
      %v711 = vpack.c.bf16 %v695, %v694
      %v712 = vpack.c.bf16 %v697, %v696
      %v713 = vpack.c.bf16 %v699, %v698
      %v714 = vpack.c.bf16 %v701, %v700
      %v715 = vpack.c.bf16 %v703, %v702
      %v716 = vpack.c.bf16 %v705, %v704
      %v717 = vpack.c.bf16 %v707, %v706
      %v718 = vpack.c.bf16 %v708, %v708
      %v719 = vld [vmem:[%s5] sm:$0xf]
      %v720 = vld [vmem:[%s5 + $0x4] sm:$0xf]
      %v721 = vld [vmem:[%s5 + $0x8] sm:$0xf]
      %v722 = vld [vmem:[%s5 + $0xc] sm:$0xf]
      %v723 = vld [vmem:[%s5 + $0x10] sm:$0xf]
      %v724 = vld [vmem:[%s5 + $0x14] sm:$0xf]
      %v725 = vld [vmem:[%s5 + $0x18] sm:$0xf]
      %v726 = vld [vmem:[%s5 + $0x1c] sm:$0xf]
      %v727 = vld [vmem:[%s5 + $0x20] sm:$0xf]
      %v728 = vld [vmem:[%s5 + $0x24] sm:$0xf]
      %v729 = vld [vmem:[%s5 + $0x28] sm:$0xf]
      %v730 = vld [vmem:[%s5 + $0x2c] sm:$0xf]
      %v731 = vld [vmem:[%s5 + $0x30] sm:$0xf]
      %v732 = vld [vmem:[%s5 + $0x34] sm:$0xf]
      %v733 = vld [vmem:[%s5 + $0x38] sm:$0xf]
      %v734 = vld [vmem:[%s5 + $0x3c] sm:$0xf]
      %v735 = vld [vmem:[%s6] sm:$0x1]
      %v737 = vlaneseq
      %v738 = vshrl.u32 %v737, 7
      %v739 = vsub.s32 0, %v738
      %v740 = vrot.slane %v735, %v739
      %v758 = vunpack.c.l.b16 %v719
      %v759 = vunpack.c.l.b16 %v720
      %v760 = vunpack.c.l.b16 %v721
      %v761 = vunpack.c.l.b16 %v722
      %v762 = vunpack.c.l.b16 %v723
      %v763 = vunpack.c.l.b16 %v724
      %v764 = vunpack.c.l.b16 %v725
      %v765 = vunpack.c.l.b16 %v726
      %v766 = vunpack.c.l.b16 %v727
      %v767 = vunpack.c.l.b16 %v728
      %v768 = vunpack.c.l.b16 %v729
      %v769 = vunpack.c.l.b16 %v730
      %v770 = vunpack.c.l.b16 %v731
      %v771 = vunpack.c.l.b16 %v732
      %v772 = vunpack.c.l.b16 %v733
      %v773 = vunpack.c.l.b16 %v734
      %v774 = vpack.c.b16 %v759, %v758
      %v775 = vpack.c.b16 %v761, %v760
      %v776 = vpack.c.b16 %v763, %v762
      %v777 = vpack.c.b16 %v765, %v764
      %v778 = vpack.c.b16 %v767, %v766
      %v779 = vpack.c.b16 %v769, %v768
      %v780 = vpack.c.b16 %v771, %v770
      %v781 = vpack.c.b16 %v773, %v772
      %790 = vmatprep.subr.bf16.mxu0 0
      %791 = vmatpush1.bf16.msra.mxu0 %v774
      %792 = vmatprep.subr.bf16.mxu0 0
      %793 = vmatpush1.bf16.msra.mxu0 %v775
      %794 = vmatprep.subr.bf16.mxu0 0
      %795 = vmatpush1.bf16.msra.mxu0 %v776
      %796 = vmatprep.subr.bf16.mxu0 0
      %797 = vmatpush1.bf16.msra.mxu0 %v777
      %798 = vmatprep.subr.bf16.mxu0 0
      %799 = vmatpush1.bf16.msra.mxu0 %v778
      %800 = vmatprep.subr.bf16.mxu0 0
      %801 = vmatpush1.bf16.msra.mxu0 %v779
      %802 = vmatprep.subr.bf16.mxu0 0
      %803 = vmatpush1.bf16.msra.mxu0 %v780
      %804 = vmatprep.subr.bf16.mxu0 0
      %805 = vmatpush1.bf16.msra.mxu0 %v781
      %806 = vmatprep.subr.bf16.mxu0 0
      %807 = vmatpush1.bf16.msra.mxu0 0
      %808 = vmatprep.subr.bf16.mxu0 0
      %809 = vmatpush1.bf16.msra.mxu0 0
      %810 = vmatprep.subr.bf16.mxu0 0
      %811 = vmatpush1.bf16.msra.mxu0 0
      %812 = vmatprep.subr.bf16.mxu0 0
      %813 = vmatpush1.bf16.msra.mxu0 0
      %814 = vmatprep.subr.bf16.mxu0 0
      %815 = vmatpush1.bf16.msra.mxu0 0
      %816 = vmatprep.subr.bf16.mxu0 0
      %817 = vmatpush1.bf16.msra.mxu0 0
      %818 = vmatprep.subr.bf16.mxu0 0
      %819 = vmatpush1.bf16.msra.mxu0 0
      %820 = vmatprep.subr.bf16.mxu0 0
      %821 = vmatpush1.bf16.msra.mxu0 0
      %822 = vmatprep.mubr.bf16.mxu0 0
      %823 = vmatmul.mubr.bf16.gmra.mrb[0].mxu0 %v709
      %v824 = vpop.f32.mrb[0].mxu0
      %v825 = vadd.f32 %v740, %v824
      %v826 = vpop.f32.mrb[0].mxu0
      %v827 = vpop.f32.mrb[0].mxu0
      %v828 = vadd.f32 %v740, %v827
      %v829 = vpop.f32.mrb[0].mxu0
      %830 = vmatprep.mubr.bf16.mxu0 0
      %831 = vmatmul.mubr.bf16.gmra.mrb[0].mxu0 %v710
      %v832 = vpop.f32.mrb[0].mxu0
      %v833 = vadd.f32 %v740, %v832
      %v834 = vpop.f32.mrb[0].mxu0
      %v835 = vpop.f32.mrb[0].mxu0
      %v836 = vadd.f32 %v740, %v835
      %v837 = vpop.f32.mrb[0].mxu0
      %838 = vmatprep.mubr.bf16.mxu0 0
      %839 = vmatmul.mubr.bf16.gmra.mrb[0].mxu0 %v711
      %v840 = vpop.f32.mrb[0].mxu0
      %v841 = vadd.f32 %v740, %v840
      %v842 = vpop.f32.mrb[0].mxu0
      %v843 = vpop.f32.mrb[0].mxu0
      %v844 = vadd.f32 %v740, %v843
      %v845 = vpop.f32.mrb[0].mxu0
      %846 = vmatprep.mubr.bf16.mxu0 0
      %847 = vmatmul.mubr.bf16.gmra.mrb[0].mxu0 %v712
      %v848 = vpop.f32.mrb[0].mxu0
      %v849 = vadd.f32 %v740, %v848
      %v850 = vpop.f32.mrb[0].mxu0
      %v851 = vpop.f32.mrb[0].mxu0
      %v852 = vadd.f32 %v740, %v851
      %v853 = vpop.f32.mrb[0].mxu0
      %854 = vmatprep.mubr.bf16.mxu0 0
      %855 = vmatmul.mubr.bf16.gmra.mrb[0].mxu0 %v713
      %v856 = vpop.f32.mrb[0].mxu0
      %v857 = vadd.f32 %v740, %v856
      %v858 = vpop.f32.mrb[0].mxu0
      %v859 = vpop.f32.mrb[0].mxu0
      %v860 = vadd.f32 %v740, %v859
      %v861 = vpop.f32.mrb[0].mxu0
      %862 = vmatprep.mubr.bf16.mxu0 0
      %863 = vmatmul.mubr.bf16.gmra.mrb[0].mxu0 %v714
      %v864 = vpop.f32.mrb[0].mxu0
      %v865 = vadd.f32 %v740, %v864
      %v866 = vpop.f32.mrb[0].mxu0
      %v867 = vpop.f32.mrb[0].mxu0
      %v868 = vadd.f32 %v740, %v867
      %v869 = vpop.f32.mrb[0].mxu0
      %870 = vmatprep.mubr.bf16.mxu0 0
      %871 = vmatmul.mubr.bf16.gmra.mrb[0].mxu0 %v715
      %v872 = vpop.f32.mrb[0].mxu0
      %v873 = vadd.f32 %v740, %v872
      %v874 = vpop.f32.mrb[0].mxu0
      %v875 = vpop.f32.mrb[0].mxu0
      %v876 = vadd.f32 %v740, %v875
      %v877 = vpop.f32.mrb[0].mxu0
      %878 = vmatprep.mubr.bf16.mxu0 0
      %879 = vmatmul.mubr.bf16.gmra.mrb[0].mxu0 %v716
      %v880 = vpop.f32.mrb[0].mxu0
      %v881 = vadd.f32 %v740, %v880
      %v882 = vpop.f32.mrb[0].mxu0
      %v883 = vpop.f32.mrb[0].mxu0
      %v884 = vadd.f32 %v740, %v883
      %v885 = vpop.f32.mrb[0].mxu0
      %886 = vmatprep.mubr.bf16.mxu0 0
      %887 = vmatmul.mubr.bf16.gmra.mrb[0].mxu0 %v717
      %v888 = vpop.f32.mrb[0].mxu0
      %v889 = vadd.f32 %v740, %v888
      %v890 = vpop.f32.mrb[0].mxu0
      %v891 = vpop.f32.mrb[0].mxu0
      %v892 = vadd.f32 %v740, %v891
      %v893 = vpop.f32.mrb[0].mxu0
      %894 = vmatprep.mubr.bf16.mxu0 0
      %895 = vmatmul.mubr.bf16.gmra.mrb[0].mxu0 %v718
      %v896 = vpop.f32.mrb[0].mxu0
      %v897 = vadd.f32 %v740, %v896
      %v898 = vpop.f32.mrb[0].mxu0
      %v899 = vpop.f32.mrb[0].mxu0
      %v900 = vpop.f32.mrb[0].mxu0
      %901 = vdwg.mxu0
      %vm902 = vcmask 64512
      %903 = vst.msk [vmem:[%s280] sm:$0xff] %vm902, %v825
      %904 = vst.msk [vmem:[%s280 + $0x8] sm:$0xff] %vm902, %v828
      %905 = vst.msk [vmem:[%s280 + $0x10] sm:$0xff] %vm902, %v833
      %906 = vst.msk [vmem:[%s280 + $0x18] sm:$0xff] %vm902, %v836
      %907 = vst.msk [vmem:[%s280 + $0x20] sm:$0xff] %vm902, %v841
      %908 = vst.msk [vmem:[%s280 + $0x28] sm:$0xff] %vm902, %v844
      %909 = vst.msk [vmem:[%s280 + $0x30] sm:$0xff] %vm902, %v849
      %910 = vst.msk [vmem:[%s280 + $0x38] sm:$0xff] %vm902, %v852
      %911 = vst.msk [vmem:[%s280 + $0x40] sm:$0xff] %vm902, %v857
      %912 = vst.msk [vmem:[%s280 + $0x48] sm:$0xff] %vm902, %v860
      %913 = vst.msk [vmem:[%s280 + $0x50] sm:$0xff] %vm902, %v865
      %914 = vst.msk [vmem:[%s280 + $0x58] sm:$0xff] %vm902, %v868
      %915 = vst.msk [vmem:[%s280 + $0x60] sm:$0xff] %vm902, %v873
      %916 = vst.msk [vmem:[%s280 + $0x68] sm:$0xff] %vm902, %v876
      %917 = vst.msk [vmem:[%s280 + $0x70] sm:$0xff] %vm902, %v881
      %918 = vst.msk [vmem:[%s280 + $0x78] sm:$0xff] %vm902, %v884
      %919 = vst.msk [vmem:[%s280 + $0x80] sm:$0xff] %vm902, %v889
      %920 = vst.msk [vmem:[%s280 + $0x88] sm:$0xff] %vm902, %v892
      %921 = vst.msk [vmem:[%s280 + $0x90] sm:$0xff] %vm902, %v897
      %s922 = smul.u32 19, %s18
      %p923 = scmp.lt.s32.totalorder %s922, 37
      %s924 = scalar_select %p923, %s922, 37
      %s925 = smul.addr %s924, 8
      %s926 = scalar_lea.vmem %s7, %s925
      // Predicated region
      $region49: #{tpu_custom_call.1} parent=47 // pred_check
        %p927 = pneg %p188
      $region50: #{tpu_custom_call.1} parent=47 // pred_check_branch
        %929 = sbr.rel (%p927) target = $region52
      $region51: #{tpu_custom_call.1} parent=47 // pred_region
        %s930 = smul.u32 19, %s18
      $region52: #{tpu_custom_call.1} parent=47 // pred_fallthru
        _
    $region48: #{tpu_custom_call.1} parent=5 // pred_fallthru
      _
    %p931 = scmp.le.s32.totalorder 2, %s13
    // Predicated region
    $region53: #{tpu_custom_call.1} parent=5 // pred_check
      %p932 = pneg %p931
    $region54: #{tpu_custom_call.1} parent=5 // pred_check_branch
      %934 = sbr.rel (%p932) target = $region56
    $region55: #{tpu_custom_call.1} parent=5 // pred_region
      %s935 = ssub.s32 %s13, 2
      // Predicated region
      $region57: #{tpu_custom_call.1} parent=55 // pred_check
        %p936 = pneg %p194
      $region58: #{tpu_custom_call.1} parent=55 // pred_check_branch
        %938 = sbr.rel (%p936) target = $region60
      $region59: #{tpu_custom_call.1} parent=55 // pred_region
        %s939 = smul.u32 19, %s19
        %p940 = scmp.lt.s32.totalorder %s939, 37
        %s941 = scalar_select %p940, %s939, 37
        %s942 = smul.addr %s941, 8
        %s943 = scalar_lea.vmem %s7, %s942
      $region60: #{tpu_custom_call.1} parent=55 // pred_fallthru
        _
    $region56: #{tpu_custom_call.1} parent=5 // pred_fallthru
      _
  $region6: #{tpu_custom_call.1} parent=0 // loop_footer
    %s17 = sadd.s32 1, %s13
  $region7: #{tpu_custom_call.1} parent=0 // loop_footer_branch
    %12 = sbr.rel target = $region3
  $region8: #{tpu_custom_call.1} parent=0 // loop_exit
    _

</llo_original>
